<compile_context>
chip_gen: v6e
topology: v6e:2x2x1
jax: 0.10.0
libtpu: 0.0.40
codegen_flags: <defaults>
</compile_context>

<pallas_src>
import functools

import numpy as np

import jax
import jax.numpy as jnp
from jax import lax
from jax.experimental import pallas as pl
from jax.experimental.pallas import tpu as pltpu

_LANE = 128
_MIN_GRID = 8                      # >= 4 steps for DMA/compute overlap; lets the
                                   # parallel row axis shard across both v7x TCs.
_FALLBACK_VMEM = 64 * 1024 * 1024  # conservative if get_tpu_info is unavailable


def _vmem_budgets():
    """Per-generation byte budgets: (pipelined-block budget, scoped VMEM limit)."""
    try:
        cap = int(pltpu.get_tpu_info().vmem_capacity_bytes)
    except Exception:
        cap = _FALLBACK_VMEM
    # ~48 MiB blocks + 96 MiB limit on 128 MiB parts (v5e/v6e),
    # ~24 MiB blocks + 48 MiB limit on 64 MiB parts (v7x).
    return (cap * 3) // 8, (cap * 3) // 4


def _sublane_multiple(dtype) -> int:
    # 8 for 4-byte dtypes, 16 for bf16/f16, 32 for int8/fp8 (sublane packing).
    return max(8, 32 // jnp.dtype(dtype).itemsize)


def _pick_row_tile(n_rows, row_bytes, dtype, block_budget):
    """Largest sublane-aligned row tile that fits the block budget while keeping
    at least _MIN_GRID grid steps whenever the row count allows it."""
    m = _sublane_multiple(dtype)
    per_row = 2 * 2 * row_bytes            # (in + out) x double-buffering
    rt = max(m, (block_budget // per_row) // m * m)
    if n_rows >= _MIN_GRID * m:
        # Cap the tile so the pipeline gets at least _MIN_GRID steps.
        rt = min(rt, max(m, (n_rows // _MIN_GRID) // m * m))
    if n_rows <= rt:
        return n_rows, 1                    # tiny input: one full-extent block
    return rt, pl.cdiv(n_rows, rt)


def _affine_store(o_ref, norm_f32, w_ref, b_ref, affine_lowp):
    if affine_lowp:
        # 16-bit affine tail: packed bf16 VALU path on v6e/v7x (half the VPU ops).
        o_ref[...] = (norm_f32.astype(o_ref.dtype) * w_ref[...]
                      + b_ref[...]).astype(o_ref.dtype)
    else:
        o_ref[...] = (norm_f32 * w_ref[...].astype(jnp.float32)
                      + b_ref[...].astype(jnp.float32)).astype(o_ref.dtype)


def _ln_kernel(x_ref, w_ref, b_ref, o_ref, *, eps, inv_d, affine_lowp):
    """Plain path: normalization axis is the (>=128-wide) lane axis."""
    x = x_ref[...].astype(jnp.float32)                        # (TR, D)
    mean = jnp.sum(x, axis=-1, keepdims=True) * inv_d
    centered = x - mean
    var = jnp.sum(centered * centered, axis=-1, keepdims=True) * inv_d
    norm = centered * lax.rsqrt(var + eps)
    _affine_store(o_ref, norm, w_ref, b_ref, affine_lowp)


def _seg_sum(x_f32, seg_bf16):
    """Per-group segmented sum (broadcast back across the group) via a
    block-diagonal 0/1 matmul on the otherwise-idle MXU.

    x is split into exact bf16 hi/lo parts (residual ~2^-18 relative), so two
    single-pass bf16 matmuls with f32 accumulation replace the previous
    Precision.HIGHEST (6-pass) f32 matmul while staying well inside 1e-5.
    """
    hi = x_f32.astype(jnp.bfloat16)
    lo = (x_f32 - hi.astype(jnp.float32)).astype(jnp.bfloat16)
    return (jnp.dot(hi, seg_bf16, preferred_element_type=jnp.float32)
            + jnp.dot(lo, seg_bf16, preferred_element_type=jnp.float32))


def _ln_packed_kernel(x_ref, w_ref, b_ref, seg_ref, o_ref, *, eps, inv_d,
                      affine_lowp):
    """Lane-dense path: several d_model groups packed into the 128-lane axis."""
    x = x_ref[...].astype(jnp.float32)                        # (TR, Dp)
    seg = seg_ref[...]                                        # (Dp, Dp) bf16 0/1
    mean = _seg_sum(x, seg) * inv_d
    centered = x - mean
    var = _seg_sum(centered * centered, seg) * inv_d
    norm = centered * lax.rsqrt(var + eps)
    _affine_store(o_ref, norm, w_ref, b_ref, affine_lowp)


@functools.partial(jax.jit, static_argnames=("eps",))
def layer_norm(x, w, b, *, eps=1e-5):
    """x: (..., d_model); w, b: (d_model,). Matches torch LayerNorm (biased var)."""
    orig_shape = x.shape
    d_model = orig_shape[-1]
    rows = 1
    for s in orig_shape[:-1]:
        rows *= s

    itemsize = jnp.dtype(x.dtype).itemsize
    inv_d = 1.0 / float(d_model)
    affine_lowp = jnp.issubdtype(x.dtype, jnp.floating) and itemsize <= 2

    x2 = x.reshape(rows, d_model)             # metadata-only reshape (contiguous)
    w2 = w.astype(x.dtype)
    b2 = b.astype(x.dtype)

    # Lane-dense packing for small d_model: fold f = 128 // d_model rows into
    # the lane axis (contiguous reshape) so HBM loads/stores are full 128-lane
    # vectors instead of masked sub-128-lane partial stores.
    fold = _LANE // d_model if (d_model < _LANE and _LANE % d_model == 0) else 1
    # TODO(synk): d_model < 128 that does not divide 128 still takes the masked
    # sub-128-lane store path.
    packed = fold > 1
    pad_rows = (-rows) % fold if packed else 0

    if packed:
        if pad_rows:
            # Zero-pad so every 128-lane group is complete; padded rows
            # normalize to b (finite) and are discarded after the call.
            x2 = jnp.concatenate(
                [x2, jnp.zeros((pad_rows, d_model), x2.dtype)], axis=0)
        d_pack = fold * d_model
        n_rows = (rows + pad_rows) // fold
        x2 = x2.reshape(n_rows, d_pack)
        w2 = jnp.tile(w2, fold).reshape(1, d_pack)
        b2 = jnp.tile(b2, fold).reshape(1, d_pack)
        gid = np.arange(d_pack) // d_model
        seg_np = (gid[:, None] == gid[None, :]).astype(np.float32)  # block-diag 0/1
        seg = jnp.asarray(seg_np, dtype=jnp.bfloat16)               # host constant
    else:
        d_pack = d_model
        n_rows = rows
        w2 = w2.reshape(1, d_model)
        b2 = b2.reshape(1, d_model)

    block_budget, vmem_limit = _vmem_budgets()
    row_tile, grid = _pick_row_tile(n_rows, d_pack * itemsize, x.dtype, block_budget)

    in_specs = [
        pl.BlockSpec((row_tile, d_pack), lambda i: (i, 0)),
        pl.BlockSpec((1, d_pack), lambda i: (0, 0)),
        pl.BlockSpec((1, d_pack), lambda i: (0, 0)),
    ]
    operands = [x2, w2, b2]
    kw = dict(eps=eps, inv_d=inv_d, affine_lowp=affine_lowp)
    if packed:
        kernel = functools.partial(_ln_packed_kernel, **kw)
        in_specs.append(pl.BlockSpec((d_pack, d_pack), lambda i: (0, 0)))
        operands.append(seg)
    else:
        kernel = functools.partial(_ln_kernel, **kw)

    # NOTE: the ragged last grid block reads rows past n_rows (stale VMEM /
    # garbage, possibly NaN). Rows are independent and Pallas masks the
    # out-of-bounds stores, so those values never reach the output.
    out = pl.pallas_call(
        kernel,
        out_shape=jax.ShapeDtypeStruct((n_rows, d_pack), x.dtype),
        grid_spec=pltpu.PrefetchScalarGridSpec(
            num_scalar_prefetch=0,
            grid=(grid,),
            in_specs=in_specs,
            out_specs=pl.BlockSpec((row_tile, d_pack), lambda i: (i, 0)),
        ),
        compiler_params=pltpu.CompilerParams(
            dimension_semantics=("parallel",),
            vmem_limit_bytes=vmem_limit,
        ),
    )(*operands)

    if packed:
        out = out.reshape(n_rows * fold, d_model)
        if pad_rows:
            out = out[:rows]
    return out.reshape(orig_shape)


if __name__ == "__main__":
    eps = 1e-5

    def jax_ref(x, w, b):
        mean = jnp.mean(x, axis=-1, keepdims=True)
        var = jnp.mean((x - mean) ** 2, axis=-1, keepdims=True)  # unbiased=False
        return (x - mean) / jnp.sqrt(var + eps) * w + b

    key = jax.random.PRNGKey(0)
    kx, kw, kb, kx2 = jax.random.split(key, 4)

    # Config-equivalent: d_model=32, layer_norm_eps=1e-5
    batch, seq, d_model = 2, 8, 32
    x = jax.random.normal(kx, (batch, seq, d_model), dtype=jnp.float32)

    # 1) parameters at module init (torch.ones / torch.zeros) -> packed path
    w0 = jnp.ones((d_model,), dtype=jnp.float32)
    b0 = jnp.zeros((d_model,), dtype=jnp.float32)
    out0 = jax.block_until_ready(layer_norm(x, w0, b0, eps=eps))
    assert jnp.allclose(out0, jax_ref(x, w0, b0), atol=1e-5, rtol=1e-5), \
        "mismatch vs reference (init params, packed path)"

    # 2) non-trivial scale/shift to exercise the affine part
    w1 = jax.random.normal(kw, (d_model,), dtype=jnp.float32)
    b1 = jax.random.normal(kb, (d_model,), dtype=jnp.float32)
    out1 = jax.block_until_ready(layer_norm(x, w1, b1, eps=eps))
    assert jnp.allclose(out1, jax_ref(x, w1, b1), atol=1e-5, rtol=1e-5), \
        "mismatch vs reference (random params, packed path)"

    # 3) rows % fold != 0 exercises the zero-pad path (rows = 15, fold = 4)
    x_rag = jax.random.normal(kx2, (3, 5, d_model), dtype=jnp.float32)
    out2 = jax.block_until_ready(layer_norm(x_rag, w1, b1, eps=eps))
    assert jnp.allclose(out2, jax_ref(x_rag, w1, b1), atol=1e-5, rtol=1e-5), \
        "mismatch vs reference (padded packed path)"

    # 4) d_model >= 128 exercises the unpacked (plain lane-axis) path
    d_wide = 256
    xw = jax.random.normal(kx, (2, 8, d_wide), dtype=jnp.float32)
    ww = jax.random.normal(kw, (d_wide,), dtype=jnp.float32)
    bw = jax.random.normal(kb, (d_wide,), dtype=jnp.float32)
    out3 = jax.block_until_ready(layer_norm(xw, ww, bw, eps=eps))
    assert jnp.allclose(out3, jax_ref(xw, ww, bw), atol=1e-5, rtol=1e-5), \
        "mismatch vs reference (unpacked path)"

    print("KERNEL_OK")
</pallas_src>

<mosaic_0001>
module attributes {stable_mosaic.version = 11 : i64} {
  func.func @_ln_packed_kernel(%arg0: i32, %arg1: memref<4x128xf32, #tpu.memory_space<vmem>>, %arg2: memref<1x128xf32, #tpu.memory_space<vmem>>, %arg3: memref<1x128xf32, #tpu.memory_space<vmem>>, %arg4: memref<128x128xbf16, #tpu.memory_space<vmem>>, %arg5: memref<4x128xf32, #tpu.memory_space<vmem>>) attributes {dimension_semantics = [#tpu.dimension_semantics<parallel>], iteration_bounds = array<i64: 1>, scalar_prefetch = 0 : i64, scratch_operands = 0 : i64, tpu.core_type = #tpu.core_type<tc>, window_params = [{transform_indices = @transform_0, window_bounds = array<i64: 4, 128>}, {pipeline_mode = #tpu.pipeline_mode<synchronous>, transform_indices = @transform_1, window_bounds = array<i64: 1, 128>}, {pipeline_mode = #tpu.pipeline_mode<synchronous>, transform_indices = @transform_2, window_bounds = array<i64: 1, 128>}, {pipeline_mode = #tpu.pipeline_mode<synchronous>, transform_indices = @transform_3, window_bounds = array<i64: 128, 128>}, {transform_indices = @transform_4, window_bounds = array<i64: 4, 128>}]} {
    %c0 = arith.constant 0 : index
    %c0_0 = arith.constant 0 : index
    %0 = vector.load %arg1[%c0, %c0_0] : memref<4x128xf32, #tpu.memory_space<vmem>>, vector<4x128xf32>
    %c0_1 = arith.constant 0 : index
    %c0_2 = arith.constant 0 : index
    %1 = vector.load %arg4[%c0_1, %c0_2] : memref<128x128xbf16, #tpu.memory_space<vmem>>, vector<128x128xbf16>
    %2 = arith.truncf %0 : vector<4x128xf32> to vector<4x128xbf16>
    %3 = arith.extf %2 : vector<4x128xbf16> to vector<4x128xf32>
    %4 = arith.subf %0, %3 : vector<4x128xf32>
    %5 = arith.truncf %4 : vector<4x128xf32> to vector<4x128xbf16>
    %cst = arith.constant dense<0.000000e+00> : vector<4x128xf32>
    %6 = tpu.matmul %2, %1, %cst {dimension_numbers = #tpu.dot_dimension_numbers<[1], [0], [0], [1], [0, 0, 1, 1], [], []>} : vector<4x128xbf16>, vector<128x128xbf16>, vector<4x128xf32> -> vector<4x128xf32>
    %cst_3 = arith.constant dense<0.000000e+00> : vector<4x128xf32>
    %7 = tpu.matmul %5, %1, %cst_3 {dimension_numbers = #tpu.dot_dimension_numbers<[1], [0], [0], [1], [0, 0, 1, 1], [], []>} : vector<4x128xbf16>, vector<128x128xbf16>, vector<4x128xf32> -> vector<4x128xf32>
    %8 = arith.addf %6, %7 : vector<4x128xf32>
    %cst_4 = arith.constant 3.125000e-02 : f32
    %9 = vector.broadcast %cst_4 : f32 to vector<4x128xf32>
    %10 = arith.mulf %8, %9 : vector<4x128xf32>
    %11 = arith.subf %0, %10 : vector<4x128xf32>
    %12 = arith.mulf %11, %11 : vector<4x128xf32>
    %13 = arith.truncf %12 : vector<4x128xf32> to vector<4x128xbf16>
    %14 = arith.extf %13 : vector<4x128xbf16> to vector<4x128xf32>
    %15 = arith.subf %12, %14 : vector<4x128xf32>
    %16 = arith.truncf %15 : vector<4x128xf32> to vector<4x128xbf16>
    %cst_5 = arith.constant dense<0.000000e+00> : vector<4x128xf32>
    %17 = tpu.matmul %13, %1, %cst_5 {dimension_numbers = #tpu.dot_dimension_numbers<[1], [0], [0], [1], [0, 0, 1, 1], [], []>} : vector<4x128xbf16>, vector<128x128xbf16>, vector<4x128xf32> -> vector<4x128xf32>
    %cst_6 = arith.constant dense<0.000000e+00> : vector<4x128xf32>
    %18 = tpu.matmul %16, %1, %cst_6 {dimension_numbers = #tpu.dot_dimension_numbers<[1], [0], [0], [1], [0, 0, 1, 1], [], []>} : vector<4x128xbf16>, vector<128x128xbf16>, vector<4x128xf32> -> vector<4x128xf32>
    %19 = arith.addf %17, %18 : vector<4x128xf32>
    %cst_7 = arith.constant 3.125000e-02 : f32
    %20 = vector.broadcast %cst_7 : f32 to vector<4x128xf32>
    %21 = arith.mulf %19, %20 : vector<4x128xf32>
    %cst_8 = arith.constant 9.99999974E-6 : f32
    %22 = vector.broadcast %cst_8 : f32 to vector<4x128xf32>
    %23 = arith.addf %21, %22 : vector<4x128xf32>
    %24 = math.rsqrt %23 : vector<4x128xf32>
    %25 = arith.mulf %11, %24 : vector<4x128xf32>
    %c0_9 = arith.constant 0 : index
    %c0_10 = arith.constant 0 : index
    %26 = vector.load %arg2[%c0_9, %c0_10] : memref<1x128xf32, #tpu.memory_space<vmem>>, vector<1x128xf32>
    %27 = vector.broadcast %26 : vector<1x128xf32> to vector<4x128xf32>
    %28 = arith.mulf %25, %27 : vector<4x128xf32>
    %c0_11 = arith.constant 0 : index
    %c0_12 = arith.constant 0 : index
    %29 = vector.load %arg3[%c0_11, %c0_12] : memref<1x128xf32, #tpu.memory_space<vmem>>, vector<1x128xf32>
    %30 = vector.broadcast %29 : vector<1x128xf32> to vector<4x128xf32>
    %31 = arith.addf %28, %30 : vector<4x128xf32>
    %c0_13 = arith.constant 0 : index
    %c0_14 = arith.constant 0 : index
    %32 = vector.load %arg5[%c0_13, %c0_14] : memref<4x128xf32, #tpu.memory_space<vmem>>, vector<4x128xf32>
    tpu.vector_store %arg5[%c0_13, %c0_14], %31 {strides = array<i32>} : memref<4x128xf32, #tpu.memory_space<vmem>>, vector<4x128xf32>,
    return
  }
  func.func @transform_0(%arg0: i32) -> (i32, i32) {
    %c0_i32 = arith.constant 0 : i32
    %c0_i32_0 = arith.constant 0 : i32
    return %arg0, %c0_i32 : i32, i32
  }
  func.func @transform_1(%arg0: i32) -> (i32, i32) {
    %c0_i32 = arith.constant 0 : i32
    %c0_i32_0 = arith.constant 0 : i32
    %c0_i32_1 = arith.constant 0 : i32
    return %c0_i32, %c0_i32_0 : i32, i32
  }
  func.func @transform_2(%arg0: i32) -> (i32, i32) {
    %c0_i32 = arith.constant 0 : i32
    %c0_i32_0 = arith.constant 0 : i32
    %c0_i32_1 = arith.constant 0 : i32
    return %c0_i32, %c0_i32_0 : i32, i32
  }
  func.func @transform_3(%arg0: i32) -> (i32, i32) {
    %c0_i32 = arith.constant 0 : i32
    %c0_i32_0 = arith.constant 0 : i32
    %c0_i32_1 = arith.constant 0 : i32
    return %c0_i32, %c0_i32_0 : i32, i32
  }
  func.func @transform_4(%arg0: i32) -> (i32, i32) {
    %c0_i32 = arith.constant 0 : i32
    %c0_i32_0 = arith.constant 0 : i32
    return %arg0, %c0_i32 : i32, i32
  }
}

</mosaic_0001>

<llo_original>
// kernel: tile.14
$region0: #{tile.14}
  %s0 = inlined_call_operand.vmem [shape: f32[4,32], index: 0, kind: input, shape index: {}]
  %s1 = inlined_call_operand.vmem [shape: f32[1,128], index: 1, kind: output, shape index: {}]
  $region1: #{tile.14} parent=0
    #allocation0 [shape = 'u8[4096]{0}', space=vmem, size = 0x1000, scoped, tag = 'scoped mem for output reshape']
    #allocation1 [shape = 'u8[4096]{0}', space=vmem, size = 0x1000, scoped, tag = 'scoped mem for input reshape']
    %s3 = sshll.u32 1, 4
    %s4 = ssub.s32 %s3, 1
    %v5 = vld [vmem:[%s0] sm:%s4]
    %6 = vst [vmem:[#allocation1] sm:%s4] %v5
    %v7 = vld [vmem:[#allocation1] sm:$0x1]
    %vm8 = vcmask 261120
    %9 = vst.msk [vmem:[#allocation0] sm:$0x1] %vm8, %v7
    %s10 = scalar_lea.vmem [#allocation1], 3
    %v11 = vld [vmem:[%s10] sm:$0x1]
    %12 = vrot.lane.b32.xlu0 %v11, 96
    %v13 = vpop.permute.xlu0 %12
    %vm14 = vcmask 1048320
    %15 = vst.msk [vmem:[#allocation0] sm:$0x1] %vm14, %v13
    %s16 = scalar_lea.vmem [#allocation1], 2
    %v17 = vld [vmem:[%s16] sm:$0x1]
    %18 = vrot.lane.b32.xlu0 %v17, 64
    %v19 = vpop.permute.xlu0 %18
    %vm20 = vcmask 785920
    %21 = vst.msk [vmem:[#allocation0] sm:$0x1] %vm20, %v19
    %s22 = scalar_lea.vmem [#allocation1], 1
    %v23 = vld [vmem:[%s22] sm:$0x1]
    %24 = vrot.lane.b32.xlu0 %v23, 32
    %v25 = vpop.permute.xlu0 %24
    %vm26 = vcmask 523520
    %27 = vst.msk [vmem:[#allocation0] sm:$0x1] %vm26, %v25
    %s29 = sshll.u32 1, 1
    %s30 = ssub.s32 %s29, 1
    %v32 = vld [vmem:[#allocation0] sm:%s30]
    %s33 = sshll.u32 1, 1
    %s34 = ssub.s32 %s33, 1
    %35 = vst [vmem:[%s1] sm:%s34] %v32

// kernel: tile.13
$region0: #{tile.13}
  #allocation0 [shape = 's32[1]{0}', space=sflag, size = 0x4, scoped, tag = 'scoped memory for tile.13']
  %s0 = inlined_call_operand.vmem [shape: f32[32], index: 0, kind: input, shape index: {}]
  %s1 = inlined_call_operand.vmem [shape: f32[4,32], index: 1, kind: output, shape index: {}]
  // Predicated region
  $region2: #{tile.13} parent=0 // pred_check
    _
  $region3: #{tile.13} parent=0 // pred_check_branch
    %3 = sbr.rel (0) target = $region5
  $region4: #{tile.13} parent=0 // pred_region
    _
  $region5: #{tile.13} parent=0 // pred_fallthru
    _
  %v4 = vld [vmem:[%s0] ss:$0 sm:$0xff]
  %5 = vst [vmem:[%s1] sm:$0xf] %v4

// kernel: layer_norm.1
$region0: #{layer_norm.1}
  #allocation0 [shape = 'u32[]', space=smem, size = 0x4, offset = 0x4, fixed_abs, tag = 'smem constant byte address 0x4 - core index']
  #allocation1 [shape = 'u32[144,128]{1,0:T(1,128)}', space=vmem, size = 0x12000, scoped, tag = 'internal scratch']
  %s0 = inlined_call_operand.vmem [shape: f32[4,128], index: 0, kind: input, shape index: {}]
  %s1 = inlined_call_operand.vmem [shape: f32[1,128], index: 1, kind: input, shape index: {}]
  %s2 = inlined_call_operand.vmem [shape: f32[1,128], index: 2, kind: input, shape index: {}]
  %s3 = inlined_call_operand.hbm [shape: bf16[128,128], index: 3, kind: input, shape index: {}]
  %s4 = inlined_call_operand.vmem [shape: f32[4,128], index: 4, kind: output, shape index: {}]
  %s5 = sld [smem:[#allocation0]]
  $region30: #{layer_norm.1} parent=0
    _
  %s7 = ssub.s32 1, %s5
  %s8 = scalar_select 0, %s7, %s5
  $region1: #{layer_norm.1} parent=0
    #allocation2 [shape = 'u8[32768]{0}', space=vmem, size = 0x8000, scoped, tag = 'input window, operand 3, single buffered']
    #allocation3 [shape = 's32[1]{0}', space=sflag, size = 0x4, scoped, tag = 'scoped memory for layer_norm.1']
    %9 = vsyncpa [#allocation3], 0
    // Predicated region
    $region2: #{layer_norm.1} parent=1 // pred_check
      _
    $region3: #{layer_norm.1} parent=1 // pred_check_branch
      %11 = sbr.rel (0) target = $region5
    $region4: #{layer_norm.1} parent=1 // pred_region
      _
    $region5: #{layer_norm.1} parent=1 // pred_fallthru
      _
    // Predicated region
    $region6: #{layer_norm.1} parent=1 // pred_check
      _
    $region7: #{layer_norm.1} parent=1 // pred_check_branch
      %13 = sbr.rel (0) target = $region9
    $region8: #{layer_norm.1} parent=1 // pred_region
      _
    $region9: #{layer_norm.1} parent=1 // pred_fallthru
      _
    // Predicated region
    $region10: #{layer_norm.1} parent=1 // pred_check
      _
    $region11: #{layer_norm.1} parent=1 // pred_check_branch
      %15 = sbr.rel (0) target = $region13
    $region12: #{layer_norm.1} parent=1 // pred_region
      _
    $region13: #{layer_norm.1} parent=1 // pred_fallthru
      _
    // Predicated region
    $region14: #{layer_norm.1} parent=1 // pred_check
      _
    $region15: #{layer_norm.1} parent=1 // pred_check_branch
      %17 = sbr.rel (0) target = $region17
    $region16: #{layer_norm.1} parent=1 // pred_region
      %s19 = ssub.s32 1024, 1024
      %20 = vsyncadd [#allocation3], %s19
      %s21 = sshll.u32 [#allocation2], 4
      %s22 = int_to_ptr.vmem [resolvable:$true] %s21
      %27 = dma.hbm_to_vmem [thread:$0]  %s3, 1024, %s22, [#allocation3], 64, 64, 4
    $region17: #{layer_norm.1} parent=1 // pred_fallthru
      _
    // Predicated region
    $region18: #{layer_norm.1} parent=1 // pred_check
      _
    $region19: #{layer_norm.1} parent=1 // pred_check_branch
      %29 = sbr.rel (0) target = $region21
    $region20: #{layer_norm.1} parent=1 // pred_region
      %30 = dma.done [#allocation3], 1024
    $region21: #{layer_norm.1} parent=1 // pred_fallthru
      _
    %v32 = vld [vmem:[%s0] sm:$0xf]
    %v33 = vld [vmem:[#allocation2] sm:$0xf]
    %v34 = vld [vmem:[#allocation2 + $0x4] sm:$0xf]
    %v35 = vld [vmem:[#allocation2 + $0x8] sm:$0xf]
    %v36 = vld [vmem:[#allocation2 + $0xc] sm:$0xf]
    %v37 = vld [vmem:[#allocation2 + $0x10] sm:$0xf]
    %v38 = vld [vmem:[#allocation2 + $0x14] sm:$0xf]
    %v39 = vld [vmem:[#allocation2 + $0x18] sm:$0xf]
    %v40 = vld [vmem:[#allocation2 + $0x1c] sm:$0xf]
    %v41 = vld [vmem:[#allocation2 + $0x20] sm:$0xf]
    %v42 = vld [vmem:[#allocation2 + $0x24] sm:$0xf]
    %v43 = vld [vmem:[#allocation2 + $0x28] sm:$0xf]
    %v44 = vld [vmem:[#allocation2 + $0x2c] sm:$0xf]
    %v45 = vld [vmem:[#allocation2 + $0x30] sm:$0xf]
    %v46 = vld [vmem:[#allocation2 + $0x34] sm:$0xf]
    %v47 = vld [vmem:[#allocation2 + $0x38] sm:$0xf]
    %v48 = vld [vmem:[#allocation2 + $0x3c] sm:$0xf]
    %v49 = vpack.c.bf16 %v32, %v32
    %v50 = vunpack.c.l.bf16 %v49
    %v51 = vsub.f32 %v32, %v50
    %v52 = vpack.c.bf16 %v51, %v51
    %v69 = vunpack.c.l.b16 %v33
    %v70 = vunpack.c.l.b16 %v34
    %v71 = vunpack.c.l.b16 %v35
    %v72 = vunpack.c.l.b16 %v36
    %v73 = vunpack.c.l.b16 %v37
    %v74 = vunpack.c.l.b16 %v38
    %v75 = vunpack.c.l.b16 %v39
    %v76 = vunpack.c.l.b16 %v40
    %v77 = vunpack.c.l.b16 %v41
    %v78 = vunpack.c.l.b16 %v42
    %v79 = vunpack.c.l.b16 %v43
    %v80 = vunpack.c.l.b16 %v44
    %v81 = vunpack.c.l.b16 %v45
    %v82 = vunpack.c.l.b16 %v46
    %v83 = vunpack.c.l.b16 %v47
    %v84 = vunpack.c.l.b16 %v48
    %v85 = vpack.c.b16 %v70, %v69
    %v86 = vpack.c.b16 %v72, %v71
    %v87 = vpack.c.b16 %v74, %v73
    %v88 = vpack.c.b16 %v76, %v75
    %v89 = vpack.c.b16 %v78, %v77
    %v90 = vpack.c.b16 %v80, %v79
    %v91 = vpack.c.b16 %v82, %v81
    %v92 = vpack.c.b16 %v84, %v83
    %101 = vmatprep.subr.bf16.mxu0 0
    %102 = vmatpush1.bf16.msra.mxu0 %v92
    %103 = vmatprep.subr.bf16.mxu0 0
    %104 = vmatpush1.bf16.msra.mxu0 %v91
    %105 = vmatprep.subr.bf16.mxu0 0
    %106 = vmatpush1.bf16.msra.mxu0 %v90
    %107 = vmatprep.subr.bf16.mxu0 0
    %108 = vmatpush1.bf16.msra.mxu0 %v89
    %109 = vmatprep.subr.bf16.mxu0 0
    %110 = vmatpush1.bf16.msra.mxu0 %v88
    %111 = vmatprep.subr.bf16.mxu0 0
    %112 = vmatpush1.bf16.msra.mxu0 %v87
    %113 = vmatprep.subr.bf16.mxu0 0
    %114 = vmatpush1.bf16.msra.mxu0 %v86
    %115 = vmatprep.subr.bf16.mxu0 0
    %116 = vmatpush1.bf16.msra.mxu0 %v85
    %117 = vmatprep.subr.bf16.mxu0 0
    %118 = vmatpush2.bf16.msra.mxu0 0
    %119 = vmatprep.subr.bf16.mxu0 0
    %120 = vmatpush2.bf16.msra.mxu0 0
    %121 = vmatprep.subr.bf16.mxu0 0
    %122 = vmatpush2.bf16.msra.mxu0 0
    %123 = vmatprep.subr.bf16.mxu0 0
    %124 = vmatpush2.bf16.msra.mxu0 0
    %125 = vmatprep.subr.bf16.mxu0 0
    %126 = vmatpush2.bf16.msra.mxu0 0
    %127 = vmatprep.subr.bf16.mxu0 0
    %128 = vmatpush2.bf16.msra.mxu0 0
    %129 = vmatprep.subr.bf16.mxu0 0
    %130 = vmatpush2.bf16.msra.mxu0 0
    %131 = vmatprep.subr.bf16.mxu0 0
    %132 = vmatpush2.bf16.msra.mxu0 0
    %133 = vmatprep.mubr.bf16.mxu0 0
    %134 = vmatmul.mubr.bf16.gmra.mxu0 %v52
    %v135 = vpop.f32.mrf.mxu0
    %v136 = vadd.f32 0.0, %v135
    %v137 = vpop.f32.mrf.mxu0
    %v138 = vpop.f32.mrf.mxu0
    %v139 = vpop.f32.mrf.mxu0
    %140 = vdwg.mxu0
    %141 = vmatprep.subr.bf16.mxu0 0
    %142 = vmatpush1.bf16.msra.mxu0 %v92
    %143 = vmatprep.subr.bf16.mxu0 0
    %144 = vmatpush1.bf16.msra.mxu0 %v91
    %145 = vmatprep.subr.bf16.mxu0 0
    %146 = vmatpush1.bf16.msra.mxu0 %v90
    %147 = vmatprep.subr.bf16.mxu0 0
    %148 = vmatpush1.bf16.msra.mxu0 %v89
    %149 = vmatprep.subr.bf16.mxu0 0
    %150 = vmatpush1.bf16.msra.mxu0 %v88
    %151 = vmatprep.subr.bf16.mxu0 0
    %152 = vmatpush1.bf16.msra.mxu0 %v87
    %153 = vmatprep.subr.bf16.mxu0 0
    %154 = vmatpush1.bf16.msra.mxu0 %v86
    %155 = vmatprep.subr.bf16.mxu0 0
    %156 = vmatpush1.bf16.msra.mxu0 %v85
    %157 = vmatprep.subr.bf16.mxu0 0
    %158 = vmatpush2.bf16.msra.mxu0 0
    %159 = vmatprep.subr.bf16.mxu0 0
    %160 = vmatpush2.bf16.msra.mxu0 0
    %161 = vmatprep.subr.bf16.mxu0 0
    %162 = vmatpush2.bf16.msra.mxu0 0
    %163 = vmatprep.subr.bf16.mxu0 0
    %164 = vmatpush2.bf16.msra.mxu0 0
    %165 = vmatprep.subr.bf16.mxu0 0
    %166 = vmatpush2.bf16.msra.mxu0 0
    %167 = vmatprep.subr.bf16.mxu0 0
    %168 = vmatpush2.bf16.msra.mxu0 0
    %169 = vmatprep.subr.bf16.mxu0 0
    %170 = vmatpush2.bf16.msra.mxu0 0
    %171 = vmatprep.subr.bf16.mxu0 0
    %172 = vmatpush2.bf16.msra.mxu0 0
    %173 = vmatprep.mubr.bf16.mxu0 0
    %174 = vmatmul.mubr.bf16.gmra.mxu0 %v49
    %v175 = vpop.f32.mrf.mxu0
    %v176 = vadd.f32 %v136, %v175
    %v177 = vpop.f32.mrf.mxu0
    %v178 = vpop.f32.mrf.mxu0
    %v179 = vpop.f32.mrf.mxu0
    %180 = vdwg.mxu0
    %v181 = vmul.f32 %v176, 0.03125
    %v182 = vsub.f32 %v32, %v181
    %v183 = vmul.f32 %v182, %v182
    %v184 = vpack.c.bf16 %v183, %v183
    %v185 = vunpack.c.l.bf16 %v184
    %v186 = vsub.f32 %v183, %v185
    %v187 = vpack.c.bf16 %v186, %v186
    %188 = vmatprep.subr.bf16.mxu0 0
    %189 = vmatpush1.bf16.msra.mxu0 %v92
    %190 = vmatprep.subr.bf16.mxu0 0
    %191 = vmatpush1.bf16.msra.mxu0 %v91
    %192 = vmatprep.subr.bf16.mxu0 0
    %193 = vmatpush1.bf16.msra.mxu0 %v90
    %194 = vmatprep.subr.bf16.mxu0 0
    %195 = vmatpush1.bf16.msra.mxu0 %v89
    %196 = vmatprep.subr.bf16.mxu0 0
    %197 = vmatpush1.bf16.msra.mxu0 %v88
    %198 = vmatprep.subr.bf16.mxu0 0
    %199 = vmatpush1.bf16.msra.mxu0 %v87
    %200 = vmatprep.subr.bf16.mxu0 0
    %201 = vmatpush1.bf16.msra.mxu0 %v86
    %202 = vmatprep.subr.bf16.mxu0 0
    %203 = vmatpush1.bf16.msra.mxu0 %v85
    %204 = vmatprep.subr.bf16.mxu0 0
    %205 = vmatpush2.bf16.msra.mxu0 0
    %206 = vmatprep.subr.bf16.mxu0 0
    %207 = vmatpush2.bf16.msra.mxu0 0
    %208 = vmatprep.subr.bf16.mxu0 0
    %209 = vmatpush2.bf16.msra.mxu0 0
    %210 = vmatprep.subr.bf16.mxu0 0
    %211 = vmatpush2.bf16.msra.mxu0 0
    %212 = vmatprep.subr.bf16.mxu0 0
    %213 = vmatpush2.bf16.msra.mxu0 0
    %214 = vmatprep.subr.bf16.mxu0 0
    %215 = vmatpush2.bf16.msra.mxu0 0
    %216 = vmatprep.subr.bf16.mxu0 0
    %217 = vmatpush2.bf16.msra.mxu0 0
    %218 = vmatprep.subr.bf16.mxu0 0
    %219 = vmatpush2.bf16.msra.mxu0 0
    %220 = vmatprep.mubr.bf16.mxu0 0
    %221 = vmatmul.mubr.bf16.gmra.mxu0 %v187
    %v222 = vpop.f32.mrf.mxu0
    %v223 = vadd.f32 0.0, %v222
    %v224 = vpop.f32.mrf.mxu0
    %v225 = vpop.f32.mrf.mxu0
    %v226 = vpop.f32.mrf.mxu0
    %227 = vdwg.mxu0
    %228 = vmatprep.subr.bf16.mxu0 0
    %229 = vmatpush1.bf16.msra.mxu0 %v92
    %230 = vmatprep.subr.bf16.mxu0 0
    %231 = vmatpush1.bf16.msra.mxu0 %v91
    %232 = vmatprep.subr.bf16.mxu0 0
    %233 = vmatpush1.bf16.msra.mxu0 %v90
    %234 = vmatprep.subr.bf16.mxu0 0
    %235 = vmatpush1.bf16.msra.mxu0 %v89
    %236 = vmatprep.subr.bf16.mxu0 0
    %237 = vmatpush1.bf16.msra.mxu0 %v88
    %238 = vmatprep.subr.bf16.mxu0 0
    %239 = vmatpush1.bf16.msra.mxu0 %v87
    %240 = vmatprep.subr.bf16.mxu0 0
    %241 = vmatpush1.bf16.msra.mxu0 %v86
    %242 = vmatprep.subr.bf16.mxu0 0
    %243 = vmatpush1.bf16.msra.mxu0 %v85
    %244 = vmatprep.subr.bf16.mxu0 0
    %245 = vmatpush2.bf16.msra.mxu0 0
    %246 = vmatprep.subr.bf16.mxu0 0
    %247 = vmatpush2.bf16.msra.mxu0 0
    %248 = vmatprep.subr.bf16.mxu0 0
    %249 = vmatpush2.bf16.msra.mxu0 0
    %250 = vmatprep.subr.bf16.mxu0 0
    %251 = vmatpush2.bf16.msra.mxu0 0
    %252 = vmatprep.subr.bf16.mxu0 0
    %253 = vmatpush2.bf16.msra.mxu0 0
    %254 = vmatprep.subr.bf16.mxu0 0
    %255 = vmatpush2.bf16.msra.mxu0 0
    %256 = vmatprep.subr.bf16.mxu0 0
    %257 = vmatpush2.bf16.msra.mxu0 0
    %258 = vmatprep.subr.bf16.mxu0 0
    %259 = vmatpush2.bf16.msra.mxu0 0
    %260 = vmatprep.mubr.bf16.mxu0 0
    %261 = vmatmul.mubr.bf16.gmra.mxu0 %v184
    %v262 = vpop.f32.mrf.mxu0
    %v263 = vadd.f32 %v223, %v262
    %v264 = vpop.f32.mrf.mxu0
    %v265 = vpop.f32.mrf.mxu0
    %v266 = vpop.f32.mrf.mxu0
    %267 = vdwg.mxu0
    %v268 = vmul.f32 %v263, 0.03125
    %v269 = vadd.f32 %v268, 1e-05
    %v270 = vrsqrt.pop %v269
    %v271 = vmul.f32 %v182, %v270
    %v272 = vld [vmem:[%s1] sm:$0x1]
    %v274 = vlaneseq
    %v275 = vshrl.u32 %v274, 7
    %v276 = vsub.s32 0, %v275
    %v277 = vrot.slane %v272, %v276
    %v279 = vmul.f32 %v271, %v277
    %v280 = vld [vmem:[%s2] sm:$0x1]
    %v282 = vlaneseq
    %v283 = vshrl.u32 %v282, 7
    %v284 = vsub.s32 0, %v283
    %v285 = vrot.slane %v280, %v284
    %v287 = vadd.f32 %v279, %v285
    %288 = vst [vmem:[%s4] sm:$0xf] %v287
    // Predicated region
    $region22: #{layer_norm.1} parent=1 // pred_check
      _
    $region23: #{layer_norm.1} parent=1 // pred_check_branch
      %290 = sbr.rel (0) target = $region25
    $region24: #{layer_norm.1} parent=1 // pred_region
      _
    $region25: #{layer_norm.1} parent=1 // pred_fallthru
      _
    // Predicated region
    $region26: #{layer_norm.1} parent=1 // pred_check
      _
    $region27: #{layer_norm.1} parent=1 // pred_check_branch
      %292 = sbr.rel (0) target = $region29
    $region28: #{layer_norm.1} parent=1 // pred_region
      _
    $region29: #{layer_norm.1} parent=1 // pred_fallthru
      _
    %293 = vsyncpa [#allocation3], 1

</llo_original>
